<compile_context>
chip_gen: v6e
topology: v6e:2x2x1
jax: 0.10.0
libtpu: 0.0.40
codegen_flags: <defaults>
</compile_context>

<pallas_src>
import functools

import jax
import jax.numpy as jnp
from jax.experimental import pallas as pl
from jax.experimental.pallas import tpu as pltpu


# --------------------------------------------------------------------------- #
# Kernel
# --------------------------------------------------------------------------- #
def _ffn_kernel(x_ref, w12_ref, b12_ref, wo_ref, bo_ref, o_ref, acc_ref):
    """One (row-tile, d_ff-tile) step of the gated FFN.

    w12_ref holds [W1_j | W2_j] packed along the lane axis (d_model, 2*tf);
    acc_ref is a (tm, d_model) f32 accumulator resident across the d_ff axis.
    """
    j = pl.program_id(1)

    @pl.when(j == 0)
    def _init():
        acc_ref[...] = jnp.zeros_like(acc_ref)

    tf = wo_ref.shape[0]                       # static d_ff tile size
    x = x_ref[...]                             # (tm, d_model)

    # fused dense_1 | dense_2 : single MXU pass over the packed weight tile
    h12 = jnp.dot(x, w12_ref[...], preferred_element_type=jnp.float32)
    h12 = h12 + b12_ref[...]                   # (tm, 2*tf) f32

    # gated activation: tanh GELU (EUP) on branch 1, linear branch 2
    h_gelu = jax.nn.gelu(h12[:, :tf], approximate=True)
    g = (h_gelu * h12[:, tf:]).astype(x.dtype)     # fuse gate + cast

    # partial output projection, accumulated in f32
    acc_ref[...] += jnp.dot(g, wo_ref[...], preferred_element_type=jnp.float32)

    @pl.when(j == pl.num_programs(1) - 1)
    def _finalize():
        o_ref[...] = (acc_ref[...] + bo_ref[...]).astype(o_ref.dtype)


# --------------------------------------------------------------------------- #
# Tile / VMEM selection helpers
# --------------------------------------------------------------------------- #
def _round_up(v, m):
    return ((v + m - 1) // m) * m


def _pick_tf(d_ff, tf_req):
    """Largest divisor of d_ff <= tf_req, preferring 128- then 8-aligned."""
    if d_ff <= tf_req:
        return d_ff
    for align in (128, 8, 1):
        for cand in range(tf_req, 0, -1):
            if cand % align == 0 and d_ff % cand == 0:
                return cand
    return d_ff


@functools.lru_cache(maxsize=None)
def _vmem_budget():
    """(working-set budget, compiler vmem_limit_bytes) for this chip."""
    cap = None
    try:
        info = pltpu.get_tpu_info()
        for name in ("vmem_capacity_bytes", "vmem_size_bytes", "vmem_bytes"):
            cap = getattr(info, name, None)
            if cap:
                break
    except Exception:
        cap = None
    if not cap:
        cap = 64 * 1024 * 1024          # conservative fallback (v7x per-TC)
    cap = int(cap)
    limit = int(cap * 0.85)             # headroom for compiler scratch
    budget = int(cap * 0.70)            # target for our explicit working set
    return budget, limit


def _vmem_need(tm, tf, d_model, itemsize):
    """Rough per-step VMEM working set (double-buffered I/O + scratch)."""
    x_t = tm * d_model * itemsize
    w12_t = d_model * 2 * tf * itemsize
    b12_t = 2 * tf * itemsize
    wo_t = tf * d_model * itemsize
    bo_t = d_model * itemsize
    o_t = tm * d_model * itemsize
    acc = tm * d_model * 4
    inter = tm * 2 * tf * 4 + tm * tf * 4 + tm * tf * itemsize
    return 2 * (x_t + w12_t + b12_t + wo_t + bo_t + o_t) + acc + inter


# --------------------------------------------------------------------------- #
# Wrapper
# --------------------------------------------------------------------------- #
@functools.partial(jax.jit, static_argnames=("tm", "tf"))
def dense_gated_act_dense(x, w1, b1, w2, b2, wo, bo, *, tm=512, tf=512):
    """x: (batch, seq, d_model) -> (batch, seq, d_model).

    Weights stored transposed vs. PyTorch nn.Linear: W1/W2 are (d_model, d_ff),
    Wo is (d_ff, d_model), so the kernel computes y = x @ W + b.
    """
    batch, seq, d_model = x.shape
    d_ff = w1.shape[1]
    M = batch * seq
    x2d = x.reshape(M, d_model)

    dtype = x.dtype
    itemsize = jnp.dtype(dtype).itemsize
    sub = max(8, 32 // itemsize)        # sublane multiple: 8 f32 / 16 bf16 / 32 i8

    vmem_budget, vmem_limit = _vmem_budget()

    # ---- tile-size selection ------------------------------------------------
    tf_eff = _pick_tf(d_ff, tf)                       # always divides d_ff
    tm_eff = min(tm, _round_up(M, sub))
    tm_eff = max(sub, (tm_eff // sub) * sub)

    # Megacore: if everything fits in a single row tile but M is large enough
    # that the extra weight pass is cheap, split so both TensorCores get work.
    if pl.cdiv(M, tm_eff) <= 1 and M >= 512:
        tm_eff = max(sub, _round_up(-(-M // 2), sub))

    # Shrink tiles (tf first, then tm) until the working set fits VMEM.
    while _vmem_need(tm_eff, tf_eff, d_model, itemsize) > vmem_budget:
        nxt_tf = _pick_tf(d_ff, max(128, tf_eff // 2)) if tf_eff > 128 else tf_eff
        if nxt_tf < tf_eff:
            tf_eff = nxt_tf
        elif tm_eff > sub:
            tm_eff = max(sub, ((tm_eff // 2) // sub) * sub)
        else:
            break

    ntf = d_ff // tf_eff
    grid = (pl.cdiv(M, tm_eff), ntf)

    # ---- pre-pack W1|W2 (interleaved per tf tile) and biases -----------------
    w12 = jnp.concatenate(
        [w1.reshape(d_model, ntf, tf_eff), w2.reshape(d_model, ntf, tf_eff)],
        axis=-1).reshape(d_model, 2 * d_ff)
    b12 = jnp.concatenate(
        [b1.reshape(ntf, tf_eff), b2.reshape(ntf, tf_eff)],
        axis=-1).reshape(1, 2 * d_ff)
    bo_2d = bo.reshape(1, d_model)

    # ---- advisory cost estimate (weights re-streamed per row tile) -----------
    w_item = jnp.dtype(w1.dtype).itemsize
    n_row = grid[0]
    cost = pl.CostEstimate(
        flops=6 * M * d_model * d_ff,                       # three matmuls
        transcendentals=M * d_ff,                           # tanh in GELU
        bytes_accessed=int(
            M * d_model * itemsize                                       # x read
            + n_row * (3 * d_model * d_ff + 2 * d_ff + d_model) * w_item  # weights
            + M * d_model * itemsize),                                   # out write
    )

    out2d = pl.pallas_call(
        _ffn_kernel,
        out_shape=jax.ShapeDtypeStruct((M, d_model), dtype),
        grid_spec=pltpu.PrefetchScalarGridSpec(
            num_scalar_prefetch=0,
            grid=grid,
            in_specs=[
                pl.BlockSpec((tm_eff, d_model),     lambda i, j: (i, 0)),  # x rows
                pl.BlockSpec((d_model, 2 * tf_eff), lambda i, j: (0, j)),  # W1|W2
                pl.BlockSpec((1, 2 * tf_eff),       lambda i, j: (0, j)),  # b1|b2
                pl.BlockSpec((tf_eff, d_model),     lambda i, j: (j, 0)),  # Wo rows
                pl.BlockSpec((1, d_model),          lambda i, j: (0, 0)),  # bo
            ],
            out_specs=pl.BlockSpec((tm_eff, d_model), lambda i, j: (i, 0)),
            scratch_shapes=[pltpu.VMEM((tm_eff, d_model), jnp.float32)],
        ),
        compiler_params=pltpu.CompilerParams(
            dimension_semantics=("parallel", "arbitrary"),
            vmem_limit_bytes=vmem_limit,
        ),
        cost_estimate=cost,
    )(x2d, w12, b12, wo, bo_2d)

    return out2d.reshape(batch, seq, d_model)


# --------------------------------------------------------------------------- #
# Reference & demo
# --------------------------------------------------------------------------- #
def _reference(x, w1, b1, w2, b2, wo, bo):
    h1 = jax.nn.gelu(x @ w1 + b1, approximate=True)
    h2 = x @ w2 + b2
    return (h1 * h2) @ wo + bo


def _make_params(key, d_model, d_ff, dtype):
    k1, k2, k3, k4, k5, k6 = jax.random.split(key, 6)
    w1 = (jax.random.normal(k1, (d_model, d_ff), jnp.float32) * 0.02).astype(dtype)
    b1 = (jax.random.normal(k2, (d_ff,), jnp.float32) * 0.02).astype(dtype)
    w2 = (jax.random.normal(k3, (d_model, d_ff), jnp.float32) * 0.02).astype(dtype)
    b2 = (jax.random.normal(k4, (d_ff,), jnp.float32) * 0.02).astype(dtype)
    wo = (jax.random.normal(k5, (d_ff, d_model), jnp.float32) * 0.02).astype(dtype)
    bo = (jax.random.normal(k6, (d_model,), jnp.float32) * 0.02).astype(dtype)
    return w1, b1, w2, b2, wo, bo


if __name__ == "__main__":
    key = jax.random.PRNGKey(0)
    kx, kp, kx2, kp2 = jax.random.split(key, 4)

    # ---- test 1: small f32, single tile in both axes ------------------------
    batch, seq, d_model, d_ff = 2, 8, 128, 256
    x = jax.random.normal(kx, (batch, seq, d_model), jnp.float32)
    params = _make_params(kp, d_model, d_ff, jnp.float32)
    out = jax.block_until_ready(dense_gated_act_dense(x, *params))
    ref = _reference(x, *params)
    assert out.shape == (batch, seq, d_model)
    assert jnp.allclose(out, ref, atol=1e-4, rtol=1e-4), "mismatch (test 1)"

    # ---- test 2: f32, multiple d_ff reduction tiles --------------------------
    d_ff2 = 512
    params2 = _make_params(kp, d_model, d_ff2, jnp.float32)
    out2 = jax.block_until_ready(dense_gated_act_dense(x, *params2, tf=128))
    ref2 = _reference(x, *params2)
    assert jnp.allclose(out2, ref2, atol=1e-4, rtol=1e-4), "mismatch (test 2)"

    # ---- test 3: f32, multiple row tiles + multiple d_ff tiles ---------------
    batch3, seq3 = 2, 128                               # M = 256 -> 2 row tiles
    x3 = jax.random.normal(kx2, (batch3, seq3, d_model), jnp.float32)
    params3 = _make_params(kp2, d_model, d_ff2, jnp.float32)
    out3 = jax.block_until_ready(
        dense_gated_act_dense(x3, *params3, tm=128, tf=128))
    ref3 = _reference(x3, *params3)
    assert jnp.allclose(out3, ref3, atol=1e-4, rtol=1e-4), "mismatch (test 3)"

    # ---- test 4: bf16 activations/weights (f32 accumulation inside) ----------
    xb = x3.astype(jnp.bfloat16)
    paramsb = tuple(p.astype(jnp.bfloat16) for p in params3)
    outb = jax.block_until_ready(
        dense_gated_act_dense(xb, *paramsb, tm=128, tf=256))
    refb = _reference(*(a.astype(jnp.float32) for a in (xb,) + paramsb))
    assert outb.dtype == jnp.bfloat16
    assert jnp.allclose(outb.astype(jnp.float32), refb, atol=5e-3, rtol=5e-2), \
        "mismatch (test 4, bf16)"

    print("KERNEL_OK")
</pallas_src>

<mosaic_0001>
module attributes {stable_mosaic.version = 11 : i64} {
  func.func @_ffn_kernel(%arg0: i32, %arg1: i32, %arg2: memref<16x128xf32, #tpu.memory_space<vmem>>, %arg3: memref<128x512xf32, #tpu.memory_space<vmem>>, %arg4: memref<1x512xf32, #tpu.memory_space<vmem>>, %arg5: memref<256x128xf32, #tpu.memory_space<vmem>>, %arg6: memref<1x128xf32, #tpu.memory_space<vmem>>, %arg7: memref<16x128xf32, #tpu.memory_space<vmem>>, %arg8: memref<16x128xf32, #tpu.memory_space<vmem>>) attributes {dimension_semantics = [#tpu.dimension_semantics<parallel>, #tpu.dimension_semantics<arbitrary>], iteration_bounds = array<i64: 1, 1>, scalar_prefetch = 0 : i64, scratch_operands = 1 : i64, tpu.core_type = #tpu.core_type<tc>, window_params = [{transform_indices = @transform_0, window_bounds = array<i64: 16, 128>}, {transform_indices = @transform_1, window_bounds = array<i64: 128, 512>}, {transform_indices = @transform_2, window_bounds = array<i64: 1, 512>}, {transform_indices = @transform_3, window_bounds = array<i64: 256, 128>}, {pipeline_mode = #tpu.pipeline_mode<synchronous>, transform_indices = @transform_4, window_bounds = array<i64: 1, 128>}, {transform_indices = @transform_5, window_bounds = array<i64: 16, 128>}]} {
    %c0_i32 = arith.constant 0 : i32
    %0 = arith.cmpi eq, %arg1, %c0_i32 : i32
    %1 = arith.extui %0 : i1 to i32
    %c0_i32_0 = arith.constant 0 : i32
    %2 = arith.cmpi ne, %1, %c0_i32_0 : i32
    scf.if %2 {
      %cst_19 = arith.constant 0.000000e+00 : f32
      %33 = vector.broadcast %cst_19 : f32 to vector<16x128xf32>
      %c0_20 = arith.constant 0 : index
      %c0_21 = arith.constant 0 : index
      %34 = vector.load %arg8[%c0_20, %c0_21] : memref<16x128xf32, #tpu.memory_space<vmem>>, vector<16x128xf32>
      tpu.vector_store %arg8[%c0_20, %c0_21], %33 {strides = array<i32>} : memref<16x128xf32, #tpu.memory_space<vmem>>, vector<16x128xf32>,
    } else {
    }
    %c0 = arith.constant 0 : index
    %c0_1 = arith.constant 0 : index
    %3 = vector.load %arg2[%c0, %c0_1] : memref<16x128xf32, #tpu.memory_space<vmem>>, vector<16x128xf32>
    %c0_2 = arith.constant 0 : index
    %c0_3 = arith.constant 0 : index
    %4 = vector.load %arg3[%c0_2, %c0_3] : memref<128x512xf32, #tpu.memory_space<vmem>>, vector<128x512xf32>
    %cst = arith.constant dense<0.000000e+00> : vector<16x512xf32>
    %5 = tpu.matmul %3, %4, %cst {dimension_numbers = #tpu.dot_dimension_numbers<[1], [0], [0], [1], [0, 0, 1, 1], [], []>} : vector<16x128xf32>, vector<128x512xf32>, vector<16x512xf32> -> vector<16x512xf32>
    %c0_4 = arith.constant 0 : index
    %c0_5 = arith.constant 0 : index
    %6 = vector.load %arg4[%c0_4, %c0_5] : memref<1x512xf32, #tpu.memory_space<vmem>>, vector<1x512xf32>
    %7 = vector.broadcast %6 : vector<1x512xf32> to vector<16x512xf32>
    %8 = arith.addf %5, %7 : vector<16x512xf32>
    %9 = vector.extract_strided_slice %8 {offsets = [0, 0], sizes = [16, 256], strides = [1, 1]} : vector<16x512xf32> to vector<16x256xf32>
    %10 = arith.mulf %9, %9 : vector<16x256xf32>
    %11 = arith.mulf %9, %10 : vector<16x256xf32>
    %cst_6 = arith.constant 4.471500e-02 : f32
    %12 = vector.broadcast %cst_6 : f32 to vector<16x256xf32>
    %13 = arith.mulf %12, %11 : vector<16x256xf32>
    %14 = arith.addf %9, %13 : vector<16x256xf32>
    %cst_7 = arith.constant 0.797884583 : f32
    %15 = vector.broadcast %cst_7 : f32 to vector<16x256xf32>
    %16 = arith.mulf %15, %14 : vector<16x256xf32>
    %17 = math.tanh %16 : vector<16x256xf32>
    %cst_8 = arith.constant 1.000000e+00 : f32
    %18 = vector.broadcast %cst_8 : f32 to vector<16x256xf32>
    %19 = arith.addf %18, %17 : vector<16x256xf32>
    %cst_9 = arith.constant 5.000000e-01 : f32
    %20 = vector.broadcast %cst_9 : f32 to vector<16x256xf32>
    %21 = arith.mulf %20, %19 : vector<16x256xf32>
    %22 = arith.mulf %9, %21 : vector<16x256xf32>
    %23 = vector.extract_strided_slice %8 {offsets = [0, 256], sizes = [16, 256], strides = [1, 1]} : vector<16x512xf32> to vector<16x256xf32>
    %24 = arith.mulf %22, %23 : vector<16x256xf32>
    %c0_10 = arith.constant 0 : index
    %c0_11 = arith.constant 0 : index
    %25 = vector.load %arg8[%c0_10, %c0_11] : memref<16x128xf32, #tpu.memory_space<vmem>>, vector<16x128xf32>
    %c0_12 = arith.constant 0 : index
    %c0_13 = arith.constant 0 : index
    %26 = vector.load %arg5[%c0_12, %c0_13] : memref<256x128xf32, #tpu.memory_space<vmem>>, vector<256x128xf32>
    %cst_14 = arith.constant dense<0.000000e+00> : vector<16x128xf32>
    %27 = tpu.matmul %24, %26, %cst_14 {dimension_numbers = #tpu.dot_dimension_numbers<[1], [0], [0], [1], [0, 0, 1, 1], [], []>} : vector<16x256xf32>, vector<256x128xf32>, vector<16x128xf32> -> vector<16x128xf32>
    %28 = arith.addf %25, %27 : vector<16x128xf32>
    %c0_15 = arith.constant 0 : index
    %c0_16 = arith.constant 0 : index
    %29 = vector.load %arg8[%c0_15, %c0_16] : memref<16x128xf32, #tpu.memory_space<vmem>>, vector<16x128xf32>
    tpu.vector_store %arg8[%c0_15, %c0_16], %28 {strides = array<i32>} : memref<16x128xf32, #tpu.memory_space<vmem>>, vector<16x128xf32>,
    %c0_i32_17 = arith.constant 0 : i32
    %30 = arith.cmpi eq, %arg1, %c0_i32_17 : i32
    %31 = arith.extui %30 : i1 to i32
    %c0_i32_18 = arith.constant 0 : i32
    %32 = arith.cmpi ne, %31, %c0_i32_18 : i32
    scf.if %32 {
      %c0_19 = arith.constant 0 : index
      %c0_20 = arith.constant 0 : index
      %33 = vector.load %arg8[%c0_19, %c0_20] : memref<16x128xf32, #tpu.memory_space<vmem>>, vector<16x128xf32>
      %c0_21 = arith.constant 0 : index
      %c0_22 = arith.constant 0 : index
      %34 = vector.load %arg6[%c0_21, %c0_22] : memref<1x128xf32, #tpu.memory_space<vmem>>, vector<1x128xf32>
      %35 = vector.broadcast %34 : vector<1x128xf32> to vector<16x128xf32>
      %36 = arith.addf %33, %35 : vector<16x128xf32>
      %c0_23 = arith.constant 0 : index
      %c0_24 = arith.constant 0 : index
      %37 = vector.load %arg7[%c0_23, %c0_24] : memref<16x128xf32, #tpu.memory_space<vmem>>, vector<16x128xf32>
      tpu.vector_store %arg7[%c0_23, %c0_24], %36 {strides = array<i32>} : memref<16x128xf32, #tpu.memory_space<vmem>>, vector<16x128xf32>,
    } else {
    }
    return
  }
  func.func @transform_0(%arg0: i32, %arg1: i32) -> (i32, i32) {
    %c0_i32 = arith.constant 0 : i32
    %c0_i32_0 = arith.constant 0 : i32
    return %arg0, %c0_i32 : i32, i32
  }
  func.func @transform_1(%arg0: i32, %arg1: i32) -> (i32, i32) {
    %c0_i32 = arith.constant 0 : i32
    %c0_i32_0 = arith.constant 0 : i32
    return %c0_i32, %arg1 : i32, i32
  }
  func.func @transform_2(%arg0: i32, %arg1: i32) -> (i32, i32) {
    %c0_i32 = arith.constant 0 : i32
    %c0_i32_0 = arith.constant 0 : i32
    return %c0_i32, %arg1 : i32, i32
  }
  func.func @transform_3(%arg0: i32, %arg1: i32) -> (i32, i32) {
    %c0_i32 = arith.constant 0 : i32
    %c0_i32_0 = arith.constant 0 : i32
    return %arg1, %c0_i32 : i32, i32
  }
  func.func @transform_4(%arg0: i32, %arg1: i32) -> (i32, i32) {
    %c0_i32 = arith.constant 0 : i32
    %c0_i32_0 = arith.constant 0 : i32
    %c0_i32_1 = arith.constant 0 : i32
    return %c0_i32, %c0_i32_0 : i32, i32
  }
  func.func @transform_5(%arg0: i32, %arg1: i32) -> (i32, i32) {
    %c0_i32 = arith.constant 0 : i32
    %c0_i32_0 = arith.constant 0 : i32
    return %arg0, %c0_i32 : i32, i32
  }
}

</mosaic_0001>

<llo_original>
// kernel: dense_gated_act_dense.1
$region0: #{dense_gated_act_dense.1}
  #allocation0 [shape = 'u32[]', space=smem, size = 0x4, offset = 0x4, fixed_abs, tag = 'smem constant byte address 0x4 - core index']
  #allocation1 [shape = 'u32[144,128]{1,0:T(1,128)}', space=vmem, size = 0x12000, scoped, tag = 'internal scratch']
  #allocation2 [shape = 'f32[16,128]{1,0:T(8,128)}', space=vmem, size = 0x2000, scoped, tag = 'scratch operand']
  %s0 = inlined_call_operand.vmem [shape: f32[16,128], index: 0, kind: input, shape index: {}]
  %s1 = inlined_call_operand.vmem [shape: f32[128,512], index: 1, kind: input, shape index: {}]
  %s2 = inlined_call_operand.vmem [shape: f32[1,512], index: 2, kind: input, shape index: {}]
  %s3 = inlined_call_operand.vmem [shape: f32[256,128], index: 3, kind: input, shape index: {}]
  %s4 = inlined_call_operand.vmem [shape: f32[1,128], index: 4, kind: input, shape index: {}]
  %s5 = inlined_call_operand.hbm [shape: f32[16,128], index: 5, kind: output, shape index: {}]
  %s6 = sld [smem:[#allocation0]]
  $region38: #{dense_gated_act_dense.1} parent=0
    _
  %s8 = ssub.s32 1, %s6
  %s9 = scalar_select 0, %s8, %s6
  $region1: #{dense_gated_act_dense.1} parent=0
    #allocation3 [shape = 'u8[8192]{0}', space=vmem, size = 0x2000, scoped, tag = 'output window, operand 0, single buffered']
    #allocation4 [shape = 's32[1]{0}', space=sflag, size = 0x4, scoped, tag = 'scoped memory for dense_gated_act_dense.1']
    %10 = vsyncpa [#allocation4], 0
    // Predicated region
    $region2: #{dense_gated_act_dense.1} parent=1 // pred_check
      _
    $region3: #{dense_gated_act_dense.1} parent=1 // pred_check_branch
      %12 = sbr.rel (0) target = $region5
    $region4: #{dense_gated_act_dense.1} parent=1 // pred_region
      _
    $region5: #{dense_gated_act_dense.1} parent=1 // pred_fallthru
      _
    // Predicated region
    $region6: #{dense_gated_act_dense.1} parent=1 // pred_check
      _
    $region7: #{dense_gated_act_dense.1} parent=1 // pred_check_branch
      %14 = sbr.rel (0) target = $region9
    $region8: #{dense_gated_act_dense.1} parent=1 // pred_region
      _
    $region9: #{dense_gated_act_dense.1} parent=1 // pred_fallthru
      _
    // Predicated region
    $region10: #{dense_gated_act_dense.1} parent=1 // pred_check
      _
    $region11: #{dense_gated_act_dense.1} parent=1 // pred_check_branch
      %16 = sbr.rel (0) target = $region13
    $region12: #{dense_gated_act_dense.1} parent=1 // pred_region
      _
    $region13: #{dense_gated_act_dense.1} parent=1 // pred_fallthru
      _
    // Predicated region
    $region14: #{dense_gated_act_dense.1} parent=1 // pred_check
      _
    $region15: #{dense_gated_act_dense.1} parent=1 // pred_check_branch
      %18 = sbr.rel (0) target = $region17
    $region16: #{dense_gated_act_dense.1} parent=1 // pred_region
      _
    $region17: #{dense_gated_act_dense.1} parent=1 // pred_fallthru
      _
    // Predicated region
    $region18: #{dense_gated_act_dense.1} parent=1 // pred_check
      _
    $region19: #{dense_gated_act_dense.1} parent=1 // pred_check_branch
      %20 = sbr.rel (0) target = $region21
    $region20: #{dense_gated_act_dense.1} parent=1 // pred_region
      _
    $region21: #{dense_gated_act_dense.1} parent=1 // pred_fallthru
      _
    %p21 = scmp.eq.s32.totalorder 0, 0
    // Predicated region
    $region22: #{dense_gated_act_dense.1} parent=1 // pred_check
      %p22 = pneg %p21
    $region23: #{dense_gated_act_dense.1} parent=1 // pred_check_branch
      %24 = sbr.rel (%p22) target = $region25
    $region24: #{dense_gated_act_dense.1} parent=1 // pred_region
      %25 = vst [vmem:[#allocation2] sm:$0xff] 0.0
      %26 = vst [vmem:[#allocation2 + $0x8] sm:$0xff] 0.0
    $region25: #{dense_gated_act_dense.1} parent=1 // pred_fallthru
      _
    %v27 = vld [vmem:[%s0] sm:$0xff]
    %v28 = vld [vmem:[%s0 + $0x8] sm:$0xff]
    %v29 = vld [vmem:[%s1] sm:$0xff]
    %v30 = vld [vmem:[%s1 + $0x8] sm:$0xff]
    %v31 = vld [vmem:[%s1 + $0x10] sm:$0xff]
    %v32 = vld [vmem:[%s1 + $0x18] sm:$0xff]
    %v33 = vld [vmem:[%s1 + $0x20] sm:$0xff]
    %v34 = vld [vmem:[%s1 + $0x28] sm:$0xff]
    %v35 = vld [vmem:[%s1 + $0x30] sm:$0xff]
    %v36 = vld [vmem:[%s1 + $0x38] sm:$0xff]
    %v37 = vld [vmem:[%s1 + $0x40] sm:$0xff]
    %v38 = vld [vmem:[%s1 + $0x48] sm:$0xff]
    %v39 = vld [vmem:[%s1 + $0x50] sm:$0xff]
    %v40 = vld [vmem:[%s1 + $0x58] sm:$0xff]
    %v41 = vld [vmem:[%s1 + $0x60] sm:$0xff]
    %v42 = vld [vmem:[%s1 + $0x68] sm:$0xff]
    %v43 = vld [vmem:[%s1 + $0x70] sm:$0xff]
    %v44 = vld [vmem:[%s1 + $0x78] sm:$0xff]
    %v45 = vld [vmem:[%s1 + $0x80] sm:$0xff]
    %v46 = vld [vmem:[%s1 + $0x88] sm:$0xff]
    %v47 = vld [vmem:[%s1 + $0x90] sm:$0xff]
    %v48 = vld [vmem:[%s1 + $0x98] sm:$0xff]
    %v49 = vld [vmem:[%s1 + $0xa0] sm:$0xff]
    %v50 = vld [vmem:[%s1 + $0xa8] sm:$0xff]
    %v51 = vld [vmem:[%s1 + $0xb0] sm:$0xff]
    %v52 = vld [vmem:[%s1 + $0xb8] sm:$0xff]
    %v53 = vld [vmem:[%s1 + $0xc0] sm:$0xff]
    %v54 = vld [vmem:[%s1 + $0xc8] sm:$0xff]
    %v55 = vld [vmem:[%s1 + $0xd0] sm:$0xff]
    %v56 = vld [vmem:[%s1 + $0xd8] sm:$0xff]
    %v57 = vld [vmem:[%s1 + $0xe0] sm:$0xff]
    %v58 = vld [vmem:[%s1 + $0xe8] sm:$0xff]
    %v59 = vld [vmem:[%s1 + $0xf0] sm:$0xff]
    %v60 = vld [vmem:[%s1 + $0xf8] sm:$0xff]
    %v61 = vld [vmem:[%s1 + $0x100] sm:$0xff]
    %v62 = vld [vmem:[%s1 + $0x108] sm:$0xff]
    %v63 = vld [vmem:[%s1 + $0x110] sm:$0xff]
    %v64 = vld [vmem:[%s1 + $0x118] sm:$0xff]
    %v65 = vld [vmem:[%s1 + $0x120] sm:$0xff]
    %v66 = vld [vmem:[%s1 + $0x128] sm:$0xff]
    %v67 = vld [vmem:[%s1 + $0x130] sm:$0xff]
    %v68 = vld [vmem:[%s1 + $0x138] sm:$0xff]
    %v69 = vld [vmem:[%s1 + $0x140] sm:$0xff]
    %v70 = vld [vmem:[%s1 + $0x148] sm:$0xff]
    %v71 = vld [vmem:[%s1 + $0x150] sm:$0xff]
    %v72 = vld [vmem:[%s1 + $0x158] sm:$0xff]
    %v73 = vld [vmem:[%s1 + $0x160] sm:$0xff]
    %v74 = vld [vmem:[%s1 + $0x168] sm:$0xff]
    %v75 = vld [vmem:[%s1 + $0x170] sm:$0xff]
    %v76 = vld [vmem:[%s1 + $0x178] sm:$0xff]
    %v77 = vld [vmem:[%s1 + $0x180] sm:$0xff]
    %v78 = vld [vmem:[%s1 + $0x188] sm:$0xff]
    %v79 = vld [vmem:[%s1 + $0x190] sm:$0xff]
    %v80 = vld [vmem:[%s1 + $0x198] sm:$0xff]
    %v81 = vld [vmem:[%s1 + $0x1a0] sm:$0xff]
    %v82 = vld [vmem:[%s1 + $0x1a8] sm:$0xff]
    %v83 = vld [vmem:[%s1 + $0x1b0] sm:$0xff]
    %v84 = vld [vmem:[%s1 + $0x1b8] sm:$0xff]
    %v85 = vld [vmem:[%s1 + $0x1c0] sm:$0xff]
    %v86 = vld [vmem:[%s1 + $0x1c8] sm:$0xff]
    %v87 = vld [vmem:[%s1 + $0x1d0] sm:$0xff]
    %v88 = vld [vmem:[%s1 + $0x1d8] sm:$0xff]
    %v89 = vld [vmem:[%s1 + $0x1e0] sm:$0xff]
    %v90 = vld [vmem:[%s1 + $0x1e8] sm:$0xff]
    %v91 = vld [vmem:[%s1 + $0x1f0] sm:$0xff]
    %v92 = vld [vmem:[%s1 + $0x1f8] sm:$0xff]
    %v93 = vld [vmem:[%s2] sm:$0xf]
    %v95 = vlaneseq
    %v96 = vshrl.u32 %v95, 7
    %v97 = vsub.s32 0, %v96
    %v98 = vrot.slane %v93, %v97
    %v99 = vlaneseq
    %v100 = vshrl.u32 %v99, 7
    %v101 = vsub.s32 1, %v100
    %v102 = vrot.slane %v93, %v101
    %v103 = vlaneseq
    %v104 = vshrl.u32 %v103, 7
    %v105 = vsub.s32 2, %v104
    %v106 = vrot.slane %v93, %v105
    %v107 = vlaneseq
    %v108 = vshrl.u32 %v107, 7
    %v109 = vsub.s32 3, %v108
    %v110 = vrot.slane %v93, %v109
    %115 = vmatprep.subr.mxu0 %v90
    %116 = vmatpush1.msra.mxu0 %v89
    %117 = vmatprep.subr.mxu0 %v86
    %118 = vmatpush1.msra.mxu0 %v85
    %119 = vmatprep.subr.mxu0 %v82
    %120 = vmatpush1.msra.mxu0 %v81
    %121 = vmatprep.subr.mxu0 %v78
    %122 = vmatpush1.msra.mxu0 %v77
    %123 = vmatprep.subr.mxu0 %v74
    %124 = vmatpush1.msra.mxu0 %v73
    %125 = vmatprep.subr.mxu0 %v70
    %126 = vmatpush1.msra.mxu0 %v69
    %127 = vmatprep.subr.mxu0 %v66
    %128 = vmatpush1.msra.mxu0 %v65
    %129 = vmatprep.subr.mxu0 %v62
    %130 = vmatpush1.msra.mxu0 %v61
    %131 = vmatprep.subr.mxu0 %v58
    %132 = vmatpush1.msra.mxu0 %v57
    %133 = vmatprep.subr.mxu0 %v54
    %134 = vmatpush1.msra.mxu0 %v53
    %135 = vmatprep.subr.mxu0 %v50
    %136 = vmatpush1.msra.mxu0 %v49
    %137 = vmatprep.subr.mxu0 %v46
    %138 = vmatpush1.msra.mxu0 %v45
    %139 = vmatprep.subr.mxu0 %v42
    %140 = vmatpush1.msra.mxu0 %v41
    %141 = vmatprep.subr.mxu0 %v38
    %142 = vmatpush1.msra.mxu0 %v37
    %143 = vmatprep.subr.mxu0 %v34
    %144 = vmatpush1.msra.mxu0 %v33
    %145 = vmatprep.subr.mxu0 %v30
    %146 = vmatpush1.msra.mxu0 %v29
    %147 = vmatprep.subr.mxu0 0.0
    %148 = vmatpush2.msra.mxu0 0.0
    %149 = vmatprep.subr.mxu0 0.0
    %150 = vmatpush2.msra.mxu0 0.0
    %151 = vmatprep.subr.mxu0 0.0
    %152 = vmatpush2.msra.mxu0 0.0
    %153 = vmatprep.subr.mxu0 0.0
    %154 = vmatpush2.msra.mxu0 0.0
    %155 = vmatprep.subr.mxu0 0.0
    %156 = vmatpush2.msra.mxu0 0.0
    %157 = vmatprep.subr.mxu0 0.0
    %158 = vmatpush2.msra.mxu0 0.0
    %159 = vmatprep.subr.mxu0 0.0
    %160 = vmatpush2.msra.mxu0 0.0
    %161 = vmatprep.subr.mxu0 0.0
    %162 = vmatpush2.msra.mxu0 0.0
    %163 = vmatprep.subr.mxu0 0.0
    %164 = vmatpush2.msra.mxu0 0.0
    %165 = vmatprep.subr.mxu0 0.0
    %166 = vmatpush2.msra.mxu0 0.0
    %167 = vmatprep.subr.mxu0 0.0
    %168 = vmatpush2.msra.mxu0 0.0
    %169 = vmatprep.subr.mxu0 0.0
    %170 = vmatpush2.msra.mxu0 0.0
    %171 = vmatprep.subr.mxu0 0.0
    %172 = vmatpush2.msra.mxu0 0.0
    %173 = vmatprep.subr.mxu0 0.0
    %174 = vmatpush2.msra.mxu0 0.0
    %175 = vmatprep.subr.mxu0 0.0
    %176 = vmatpush2.msra.mxu0 0.0
    %177 = vmatprep.subr.mxu0 0.0
    %178 = vmatpush2.msra.mxu0 0.0
    %179 = vmatprep.mubr.f32.mxu0 0.0
    %180 = vmatmul.mubr.f32.gmra.mxu0 %v27
    %v181 = vpop.f32.mrf.mxu0
    %v182 = vadd.f32 %v98, %v181
    %v183 = vpop.f32.mrf.mxu0
    %v184 = vadd.f32 %v102, %v183
    %185 = vmatprep.mubr.f32.mxu0 0.0
    %186 = vmatmul.mubr.f32.gmra.mxu0 %v28
    %v187 = vpop.f32.mrf.mxu0
    %v188 = vadd.f32 %v98, %v187
    %v189 = vpop.f32.mrf.mxu0
    %v190 = vadd.f32 %v102, %v189
    %191 = vdwg.mxu0
    %192 = vmatprep.subr.mxu0 %v92
    %193 = vmatpush1.msra.mxu0 %v91
    %194 = vmatprep.subr.mxu0 %v88
    %195 = vmatpush1.msra.mxu0 %v87
    %196 = vmatprep.subr.mxu0 %v84
    %197 = vmatpush1.msra.mxu0 %v83
    %198 = vmatprep.subr.mxu0 %v80
    %199 = vmatpush1.msra.mxu0 %v79
    %200 = vmatprep.subr.mxu0 %v76
    %201 = vmatpush1.msra.mxu0 %v75
    %202 = vmatprep.subr.mxu0 %v72
    %203 = vmatpush1.msra.mxu0 %v71
    %204 = vmatprep.subr.mxu0 %v68
    %205 = vmatpush1.msra.mxu0 %v67
    %206 = vmatprep.subr.mxu0 %v64
    %207 = vmatpush1.msra.mxu0 %v63
    %208 = vmatprep.subr.mxu0 %v60
    %209 = vmatpush1.msra.mxu0 %v59
    %210 = vmatprep.subr.mxu0 %v56
    %211 = vmatpush1.msra.mxu0 %v55
    %212 = vmatprep.subr.mxu0 %v52
    %213 = vmatpush1.msra.mxu0 %v51
    %214 = vmatprep.subr.mxu0 %v48
    %215 = vmatpush1.msra.mxu0 %v47
    %216 = vmatprep.subr.mxu0 %v44
    %217 = vmatpush1.msra.mxu0 %v43
    %218 = vmatprep.subr.mxu0 %v40
    %219 = vmatpush1.msra.mxu0 %v39
    %220 = vmatprep.subr.mxu0 %v36
    %221 = vmatpush1.msra.mxu0 %v35
    %222 = vmatprep.subr.mxu0 %v32
    %223 = vmatpush1.msra.mxu0 %v31
    %224 = vmatprep.subr.mxu0 0.0
    %225 = vmatpush2.msra.mxu0 0.0
    %226 = vmatprep.subr.mxu0 0.0
    %227 = vmatpush2.msra.mxu0 0.0
    %228 = vmatprep.subr.mxu0 0.0
    %229 = vmatpush2.msra.mxu0 0.0
    %230 = vmatprep.subr.mxu0 0.0
    %231 = vmatpush2.msra.mxu0 0.0
    %232 = vmatprep.subr.mxu0 0.0
    %233 = vmatpush2.msra.mxu0 0.0
    %234 = vmatprep.subr.mxu0 0.0
    %235 = vmatpush2.msra.mxu0 0.0
    %236 = vmatprep.subr.mxu0 0.0
    %237 = vmatpush2.msra.mxu0 0.0
    %238 = vmatprep.subr.mxu0 0.0
    %239 = vmatpush2.msra.mxu0 0.0
    %240 = vmatprep.subr.mxu0 0.0
    %241 = vmatpush2.msra.mxu0 0.0
    %242 = vmatprep.subr.mxu0 0.0
    %243 = vmatpush2.msra.mxu0 0.0
    %244 = vmatprep.subr.mxu0 0.0
    %245 = vmatpush2.msra.mxu0 0.0
    %246 = vmatprep.subr.mxu0 0.0
    %247 = vmatpush2.msra.mxu0 0.0
    %248 = vmatprep.subr.mxu0 0.0
    %249 = vmatpush2.msra.mxu0 0.0
    %250 = vmatprep.subr.mxu0 0.0
    %251 = vmatpush2.msra.mxu0 0.0
    %252 = vmatprep.subr.mxu0 0.0
    %253 = vmatpush2.msra.mxu0 0.0
    %254 = vmatprep.subr.mxu0 0.0
    %255 = vmatpush2.msra.mxu0 0.0
    %256 = vmatprep.mubr.f32.mxu0 0.0
    %257 = vmatmul.mubr.f32.gmra.mxu0 %v27
    %v258 = vpop.f32.mrf.mxu0
    %v259 = vadd.f32 %v106, %v258
    %v260 = vpop.f32.mrf.mxu0
    %v261 = vadd.f32 %v110, %v260
    %262 = vmatprep.mubr.f32.mxu0 0.0
    %263 = vmatmul.mubr.f32.gmra.mxu0 %v28
    %v264 = vpop.f32.mrf.mxu0
    %v265 = vadd.f32 %v106, %v264
    %v266 = vpop.f32.mrf.mxu0
    %v267 = vadd.f32 %v110, %v266
    %268 = vdwg.mxu0
    %v269 = vmul.f32 %v182, %v182
    %v270 = vmul.f32 %v184, %v184
    %v271 = vmul.f32 %v188, %v188
    %v272 = vmul.f32 %v190, %v190
    %v273 = vmul.f32 %v182, %v269
    %v274 = vmul.f32 %v184, %v270
    %v275 = vmul.f32 %v188, %v271
    %v276 = vmul.f32 %v190, %v272
    %v277 = vmul.f32 %v273, 0.044715
    %v278 = vmul.f32 %v274, 0.044715
    %v279 = vmul.f32 %v275, 0.044715
    %v280 = vmul.f32 %v276, 0.044715
    %v281 = vadd.f32 %v182, %v277
    %v282 = vadd.f32 %v184, %v278
    %v283 = vadd.f32 %v188, %v279
    %v284 = vadd.f32 %v190, %v280
    %v285 = vmul.f32 %v281, 0.7978846
    %v286 = vmul.f32 %v282, 0.7978846
    %v287 = vmul.f32 %v283, 0.7978846
    %v288 = vmul.f32 %v284, 0.7978846
    %v289 = vtanh.pop %v285
    %v290 = vtanh.pop %v286
    %v291 = vtanh.pop %v287
    %v292 = vtanh.pop %v288
    %v293 = vadd.f32 %v289, 1.0
    %v294 = vadd.f32 %v290, 1.0
    %v295 = vadd.f32 %v291, 1.0
    %v296 = vadd.f32 %v292, 1.0
    %v297 = vmul.f32 %v293, 0.5
    %v298 = vmul.f32 %v294, 0.5
    %v299 = vmul.f32 %v295, 0.5
    %v300 = vmul.f32 %v296, 0.5
    %v301 = vmul.f32 %v182, %v297
    %v302 = vmul.f32 %v184, %v298
    %v303 = vmul.f32 %v188, %v299
    %v304 = vmul.f32 %v190, %v300
    %v305 = vmul.f32 %v301, %v259
    %v306 = vmul.f32 %v302, %v261
    %v307 = vmul.f32 %v303, %v265
    %v308 = vmul.f32 %v304, %v267
    %v309 = vld [vmem:[#allocation2] sm:$0xff]
    %v310 = vld [vmem:[#allocation2 + $0x8] sm:$0xff]
    %v311 = vld [vmem:[%s3] sm:$0xff]
    %v312 = vld [vmem:[%s3 + $0x8] sm:$0xff]
    %v313 = vld [vmem:[%s3 + $0x10] sm:$0xff]
    %v314 = vld [vmem:[%s3 + $0x18] sm:$0xff]
    %v315 = vld [vmem:[%s3 + $0x20] sm:$0xff]
    %v316 = vld [vmem:[%s3 + $0x28] sm:$0xff]
    %v317 = vld [vmem:[%s3 + $0x30] sm:$0xff]
    %v318 = vld [vmem:[%s3 + $0x38] sm:$0xff]
    %v319 = vld [vmem:[%s3 + $0x40] sm:$0xff]
    %v320 = vld [vmem:[%s3 + $0x48] sm:$0xff]
    %v321 = vld [vmem:[%s3 + $0x50] sm:$0xff]
    %v322 = vld [vmem:[%s3 + $0x58] sm:$0xff]
    %v323 = vld [vmem:[%s3 + $0x60] sm:$0xff]
    %v324 = vld [vmem:[%s3 + $0x68] sm:$0xff]
    %v325 = vld [vmem:[%s3 + $0x70] sm:$0xff]
    %v326 = vld [vmem:[%s3 + $0x78] sm:$0xff]
    %v327 = vld [vmem:[%s3 + $0x80] sm:$0xff]
    %v328 = vld [vmem:[%s3 + $0x88] sm:$0xff]
    %v329 = vld [vmem:[%s3 + $0x90] sm:$0xff]
    %v330 = vld [vmem:[%s3 + $0x98] sm:$0xff]
    %v331 = vld [vmem:[%s3 + $0xa0] sm:$0xff]
    %v332 = vld [vmem:[%s3 + $0xa8] sm:$0xff]
    %v333 = vld [vmem:[%s3 + $0xb0] sm:$0xff]
    %v334 = vld [vmem:[%s3 + $0xb8] sm:$0xff]
    %v335 = vld [vmem:[%s3 + $0xc0] sm:$0xff]
    %v336 = vld [vmem:[%s3 + $0xc8] sm:$0xff]
    %v337 = vld [vmem:[%s3 + $0xd0] sm:$0xff]
    %v338 = vld [vmem:[%s3 + $0xd8] sm:$0xff]
    %v339 = vld [vmem:[%s3 + $0xe0] sm:$0xff]
    %v340 = vld [vmem:[%s3 + $0xe8] sm:$0xff]
    %v341 = vld [vmem:[%s3 + $0xf0] sm:$0xff]
    %v342 = vld [vmem:[%s3 + $0xf8] sm:$0xff]
    %343 = vmatprep.subr.mxu0 0.0
    %344 = vmatpush1.msra.mxu0 %v326
    %345 = vmatprep.subr.mxu0 0.0
    %346 = vmatpush1.msra.mxu0 %v325
    %347 = vmatprep.subr.mxu0 0.0
    %348 = vmatpush1.msra.mxu0 %v324
    %349 = vmatprep.subr.mxu0 0.0
    %350 = vmatpush1.msra.mxu0 %v323
    %351 = vmatprep.subr.mxu0 0.0
    %352 = vmatpush1.msra.mxu0 %v322
    %353 = vmatprep.subr.mxu0 0.0
    %354 = vmatpush1.msra.mxu0 %v321
    %355 = vmatprep.subr.mxu0 0.0
    %356 = vmatpush1.msra.mxu0 %v320
    %357 = vmatprep.subr.mxu0 0.0
    %358 = vmatpush1.msra.mxu0 %v319
    %359 = vmatprep.subr.mxu0 0.0
    %360 = vmatpush1.msra.mxu0 %v318
    %361 = vmatprep.subr.mxu0 0.0
    %362 = vmatpush1.msra.mxu0 %v317
    %363 = vmatprep.subr.mxu0 0.0
    %364 = vmatpush1.msra.mxu0 %v316
    %365 = vmatprep.subr.mxu0 0.0
    %366 = vmatpush1.msra.mxu0 %v315
    %367 = vmatprep.subr.mxu0 0.0
    %368 = vmatpush1.msra.mxu0 %v314
    %369 = vmatprep.subr.mxu0 0.0
    %370 = vmatpush1.msra.mxu0 %v313
    %371 = vmatprep.subr.mxu0 0.0
    %372 = vmatpush1.msra.mxu0 %v312
    %373 = vmatprep.subr.mxu0 0.0
    %374 = vmatpush1.msra.mxu0 %v311
    %375 = vmatprep.subr.mxu0 0.0
    %376 = vmatpush2.msra.mxu0 %v342
    %377 = vmatprep.subr.mxu0 0.0
    %378 = vmatpush2.msra.mxu0 %v341
    %379 = vmatprep.subr.mxu0 0.0
    %380 = vmatpush2.msra.mxu0 %v340
    %381 = vmatprep.subr.mxu0 0.0
    %382 = vmatpush2.msra.mxu0 %v339
    %383 = vmatprep.subr.mxu0 0.0
    %384 = vmatpush2.msra.mxu0 %v338
    %385 = vmatprep.subr.mxu0 0.0
    %386 = vmatpush2.msra.mxu0 %v337
    %387 = vmatprep.subr.mxu0 0.0
    %388 = vmatpush2.msra.mxu0 %v336
    %389 = vmatprep.subr.mxu0 0.0
    %390 = vmatpush2.msra.mxu0 %v335
    %391 = vmatprep.subr.mxu0 0.0
    %392 = vmatpush2.msra.mxu0 %v334
    %393 = vmatprep.subr.mxu0 0.0
    %394 = vmatpush2.msra.mxu0 %v333
    %395 = vmatprep.subr.mxu0 0.0
    %396 = vmatpush2.msra.mxu0 %v332
    %397 = vmatprep.subr.mxu0 0.0
    %398 = vmatpush2.msra.mxu0 %v331
    %399 = vmatprep.subr.mxu0 0.0
    %400 = vmatpush2.msra.mxu0 %v330
    %401 = vmatprep.subr.mxu0 0.0
    %402 = vmatpush2.msra.mxu0 %v329
    %403 = vmatprep.subr.mxu0 0.0
    %404 = vmatpush2.msra.mxu0 %v328
    %405 = vmatprep.subr.mxu0 0.0
    %406 = vmatpush2.msra.mxu0 %v327
    %407 = vmatprep.mubr.f32.mxu0 %v306
    %408 = vmatmul.mubr.f32.gmra.mxu0 %v305
    %v409 = vpop.f32.mrf.mxu0
    %v410 = vadd.f32 0.0, %v409
    %v411 = vpop.f32.mrf.mxu0
    %412 = vmatprep.mubr.f32.mxu0 %v308
    %413 = vmatmul.mubr.f32.gmra.mxu0 %v307
    %v414 = vpop.f32.mrf.mxu0
    %v415 = vadd.f32 0.0, %v414
    %v416 = vpop.f32.mrf.mxu0
    %417 = vdwg.mxu0
    %v418 = vadd.f32 %v309, %v410
    %v419 = vadd.f32 %v310, %v415
    %420 = vst [vmem:[#allocation2] sm:$0xff] %v418
    %421 = vst [vmem:[#allocation2 + $0x8] sm:$0xff] %v419
    // Predicated region
    $region26: #{dense_gated_act_dense.1} parent=1 // pred_check
      %p422 = pneg %p21
    $region27: #{dense_gated_act_dense.1} parent=1 // pred_check_branch
      %424 = sbr.rel (%p422) target = $region29
    $region28: #{dense_gated_act_dense.1} parent=1 // pred_region
      %v425 = vld [vmem:[#allocation2] sm:$0xff]
      %v426 = vld [vmem:[#allocation2 + $0x8] sm:$0xff]
      %v427 = vld [vmem:[%s4] sm:$0x1]
      %v429 = vlaneseq
      %v430 = vshrl.u32 %v429, 7
      %v431 = vsub.s32 0, %v430
      %v432 = vrot.slane %v427, %v431
      %v434 = vadd.f32 %v425, %v432
      %v435 = vadd.f32 %v426, %v432
      %436 = vst [vmem:[#allocation3] sm:$0xff] %v434
      %437 = vst [vmem:[#allocation3 + $0x8] sm:$0xff] %v435
    $region29: #{dense_gated_act_dense.1} parent=1 // pred_fallthru
      _
    // Predicated region
    $region30: #{dense_gated_act_dense.1} parent=1 // pred_check
      _
    $region31: #{dense_gated_act_dense.1} parent=1 // pred_check_branch
      %439 = sbr.rel (0) target = $region33
    $region32: #{dense_gated_act_dense.1} parent=1 // pred_region
      %s441 = ssub.s32 256, 256
      %442 = vsyncadd [#allocation4], %s441
      %s443 = sshll.u32 [#allocation3], 4
      %s444 = int_to_ptr.vmem [resolvable:$true] %s443
      %449 = dma.vmem_to_hbm [thread:$0]  %s444, 256, %s5, [#allocation4], 128, 128, 8
    $region33: #{dense_gated_act_dense.1} parent=1 // pred_fallthru
      _
    // Predicated region
    $region34: #{dense_gated_act_dense.1} parent=1 // pred_check
      _
    $region35: #{dense_gated_act_dense.1} parent=1 // pred_check_branch
      %451 = sbr.rel (0) target = $region37
    $region36: #{dense_gated_act_dense.1} parent=1 // pred_region
      %452 = dma.done [#allocation4], 256
    $region37: #{dense_gated_act_dense.1} parent=1 // pred_fallthru
      _
    %453 = vsyncpa [#allocation4], 1

</llo_original>
